<compile_context>
chip_gen: v7x
topology: tpu7x:2x2x1
jax: 0.10.0
libtpu: 0.0.40
codegen_flags: <defaults>
</compile_context>

<pallas_src>
import functools

import jax
import jax.numpy as jnp
import numpy as np
from jax import lax
from jax.experimental import pallas as pl
from jax.experimental.pallas import tpu as pltpu


# ---------------------------------------------------------------------------
# Kernel 1: down-convolution as a transposed matmul.
#   out = ReLU( W_flat @ LeakyReLU_0.2(A) )
#   W_flat : (ni, 16*nf)  resident;  A : (16*nf, M1) streamed in lane tiles,
#   M1 = N*Ho*Wo on the lane axis -> lane-dense output (ni, tile).
# ---------------------------------------------------------------------------
def _down_matmul_kernel(w_ref, a_ref, o_ref):
    a = a_ref[...]
    a = jnp.where(a > 0, a, 0.2 * a)                          # fused LeakyReLU(0.2)
    acc = jnp.dot(w_ref[...], a, preferred_element_type=jnp.float32)
    o_ref[...] = jnp.maximum(acc, 0.0).astype(o_ref.dtype)    # fused ReLU


def _downconv_matmul(w_flat, a_t, *, tile_m):
    ni, k = w_flat.shape
    k2, m = a_t.shape
    assert k == k2
    tn = m if m <= tile_m else tile_m                         # full dim or 128-multiple
    return pl.pallas_call(
        _down_matmul_kernel,
        out_shape=jax.ShapeDtypeStruct((ni, m), jnp.float32),
        grid=(pl.cdiv(m, tn),),
        in_specs=[
            pl.BlockSpec((ni, k), lambda j: (0, 0)),          # weights resident
            pl.BlockSpec((k, tn), lambda j: (0, j)),          # im2col patches, lane-tiled
        ],
        out_specs=pl.BlockSpec((ni, tn), lambda j: (0, j)),
        compiler_params=pltpu.CompilerParams(dimension_semantics=("parallel",)),
    )(w_flat, a_t)


# ---------------------------------------------------------------------------
# Kernel 2: transposed conv via sub-pixel phase decomposition + fused BN stats.
#   P^T = W_packed @ A,  W_packed : (4*nf, 4*ni) resident, A : (4*ni, M2) lane-tiled,
#   M2 = N*(Ho+1)*(Wo+1) windows of d; row group g = 2a+b holds output parity (a,b).
#   Per-channel sum / sum-of-squares over *valid* output pixels are accumulated in a
#   resident (nf, 2) output (grid axis "arbitrary"); halo windows are identified from
#   the (p, q) coordinate slab and ragged out-of-range tile columns from the column id.
# ---------------------------------------------------------------------------
def _up_matmul_bn_kernel(w_ref, a_ref, pq_ref, o_ref, stats_ref, *,
                         nf, ho, wo, m_total):
    j = pl.program_id(0)
    tn = o_ref.shape[1]

    @pl.when(j == 0)
    def _init():
        stats_ref[...] = jnp.zeros_like(stats_ref)

    acc = jnp.dot(w_ref[...], a_ref[...], preferred_element_type=jnp.float32)  # (4*nf, tn)
    o_ref[...] = acc.astype(o_ref.dtype)

    col = j * tn + lax.broadcasted_iota(jnp.int32, (1, tn), 1)
    in_range = col < m_total                                  # guards ragged last tile
    p = pq_ref[0:1, :]                                        # window row index, (1, tn)
    q = pq_ref[1:2, :]                                        # window col index, (1, tn)

    s1 = jnp.zeros((nf, 1), jnp.float32)
    s2 = jnp.zeros((nf, 1), jnp.float32)
    for a in (0, 1):                                          # output row parity
        vp = ((p + a) >= 1) & ((p + a) <= ho)
        for b in (0, 1):                                      # output col parity
            g = 2 * a + b
            vq = ((q + b) >= 1) & ((q + b) <= wo)
            valid = vp & vq & in_range                        # (1, tn)
            vals = jnp.where(valid, acc[g * nf:(g + 1) * nf, :], 0.0)
            s1 = s1 + jnp.sum(vals, axis=1, keepdims=True)
            s2 = s2 + jnp.sum(vals * vals, axis=1, keepdims=True)
    stats_ref[:, 0:1] += s1
    stats_ref[:, 1:2] += s2


def _upconv_matmul_bn(w_packed, a_t, pq, *, nf, ho, wo, tile_m):
    r, k = w_packed.shape
    k2, m = a_t.shape
    assert k == k2
    tn = m if m <= tile_m else tile_m
    kernel = functools.partial(_up_matmul_bn_kernel, nf=nf, ho=ho, wo=wo, m_total=m)
    return pl.pallas_call(
        kernel,
        out_shape=(
            jax.ShapeDtypeStruct((r, m), jnp.float32),        # P^T (packed phases)
            jax.ShapeDtypeStruct((nf, 2), jnp.float32),       # [sum, sumsq] per channel
        ),
        grid=(pl.cdiv(m, tn),),
        in_specs=[
            pl.BlockSpec((r, k), lambda j: (0, 0)),           # packed weights resident
            pl.BlockSpec((k, tn), lambda j: (0, j)),          # 2x2 windows of d
            pl.BlockSpec((2, tn), lambda j: (0, j)),          # (p, q) window coordinates
        ],
        out_specs=(
            pl.BlockSpec((r, tn), lambda j: (0, j)),
            pl.BlockSpec((nf, 2), lambda j: (0, 0)),          # resident accumulator
        ),
        compiler_params=pltpu.CompilerParams(dimension_semantics=("arbitrary",)),
    )(w_packed, a_t, pq)


# ---------------------------------------------------------------------------
# Forward pass
# ---------------------------------------------------------------------------
def unet_block_innermost(x_nchw, w_down, w_up, gamma, beta,
                         eps=1e-5, tile_m=512, compute_dtype=jnp.float32):
    """
    x_nchw : (N, nf, H, W) f32; w_down : (ni, nf, 4, 4) OIHW; w_up : (ni, nf, 4, 4)
    (ConvTranspose in/out/kh/kw); gamma, beta : (nf,).  Returns (N, 2*nf, H, W).
    """
    N, nf, H, W = x_nchw.shape
    ni = w_down.shape[0]
    Ho, Wo = H // 2, W // 2
    M2 = N * (Ho + 1) * (Wo + 1)

    # ---- down conv (k=4, s=2, p=1): im2col directly from NCHW, channel-major K ----
    x_pad = jnp.pad(x_nchw, ((0, 0), (0, 0), (1, 1), (1, 1)))
    slabs = [x_pad[:, :, kh:kh + 2 * Ho:2, kw:kw + 2 * Wo:2]
             for kh in range(4) for kw in range(4)]
    a1 = jnp.stack(slabs, axis=2)                              # (N, nf, 16, Ho, Wo)
    a1 = jnp.transpose(a1, (1, 2, 0, 3, 4)).reshape(nf * 16, N * Ho * Wo)
    w1 = w_down.reshape(ni, nf * 16)                           # K order = (ci, kh, kw)
    d_t = _downconv_matmul(w1.astype(compute_dtype), a1.astype(compute_dtype),
                           tile_m=tile_m)                      # (ni, N*Ho*Wo) = ReLU(conv(leaky(x)))

    # ---- transposed conv via phase decomposition ---------------------------------
    # Window (p, q) = d[p-1:p+1, q-1:q+1] produces outputs y[2p-1+a, 2q-1+b] for
    # a, b in {0,1} with kernel taps (kh, kw) = (2-2r+a, 2-2s+b); halos are cropped later.
    d_sp = d_t.reshape(ni, N, Ho, Wo)
    d_pad = jnp.pad(d_sp, ((0, 0), (0, 0), (1, 1), (1, 1)))    # (ni, N, Ho+2, Wo+2)
    slabs2 = [d_pad[:, :, r:r + Ho + 1, s:s + Wo + 1] for r in (0, 1) for s in (0, 1)]
    a2 = jnp.stack(slabs2, axis=0).reshape(4 * ni, M2)         # K order = (r, s, ci)

    w_perm = jnp.transpose(w_up, (2, 3, 0, 1)).reshape(2, 2, 2, 2, ni, nf)
    w_perm = jnp.flip(w_perm, axis=(0, 2))                     # axes (r, a, s, b, ci, co)
    w2 = jnp.transpose(w_perm, (1, 3, 5, 0, 2, 4)).reshape(4 * nf, 4 * ni)

    # (p, q) window coordinates; phase validity is derived in-kernel from these.
    pp = jnp.arange(Ho + 1, dtype=jnp.int32)
    qq = jnp.arange(Wo + 1, dtype=jnp.int32)
    p_grid = jnp.broadcast_to(pp[None, :, None], (N, Ho + 1, Wo + 1)).reshape(-1)
    q_grid = jnp.broadcast_to(qq[None, None, :], (N, Ho + 1, Wo + 1)).reshape(-1)
    pq = jnp.stack([p_grid, q_grid], axis=0)                   # (2, M2) int32

    p_t, stats = _upconv_matmul_bn(w2.astype(compute_dtype), a2.astype(compute_dtype),
                                   pq, nf=nf, ho=Ho, wo=Wo, tile_m=tile_m)

    # ---- BatchNorm2d: finalize fused stats (training-mode, biased variance) -------
    cnt = jnp.float32(N * H * W)
    mean = stats[:, 0] / cnt
    var = stats[:, 1] / cnt - mean * mean
    scale = gamma / jnp.sqrt(var + eps)
    shift = beta - mean * scale

    # ---- thin XLA epilogue: depth-to-space, halo crop, BN affine, skip concat -----
    y = p_t.reshape(2, 2, nf, N, Ho + 1, Wo + 1)               # (a, b, co, n, p, q)
    y = jnp.transpose(y, (3, 2, 4, 0, 5, 1)).reshape(N, nf, 2 * (Ho + 1), 2 * (Wo + 1))
    y = y[:, :, 1:1 + H, 1:1 + W]
    ybn = y * scale[None, :, None, None] + shift[None, :, None, None]
    return jnp.concatenate([x_nchw, ybn], axis=1)


# ---------------------------------------------------------------------------
# Pure-JAX reference (correctness check only)
# ---------------------------------------------------------------------------
def unet_block_ref(x_nchw, w_down, w_up, gamma, beta, eps=1e-5):
    a = jnp.where(x_nchw > 0, x_nchw, 0.2 * x_nchw)
    d = lax.conv_general_dilated(
        a, w_down, window_strides=(2, 2), padding=((1, 1), (1, 1)),
        dimension_numbers=("NCHW", "OIHW", "NCHW"),
    )
    r = jnp.maximum(d, 0.0)
    w_up_conv = jnp.flip(jnp.transpose(w_up, (1, 0, 2, 3)), (2, 3))
    y = lax.conv_general_dilated(
        r, w_up_conv, window_strides=(1, 1), padding=((2, 2), (2, 2)),
        lhs_dilation=(2, 2), dimension_numbers=("NCHW", "OIHW", "NCHW"),
    )
    mean = jnp.mean(y, axis=(0, 2, 3), keepdims=True)
    var = jnp.mean((y - mean) ** 2, axis=(0, 2, 3), keepdims=True)
    ybn = (y - mean) / jnp.sqrt(var + eps) * gamma.reshape(1, -1, 1, 1) + beta.reshape(
        1, -1, 1, 1
    )
    return jnp.concatenate([x_nchw, ybn], axis=1)


# ---------------------------------------------------------------------------
if __name__ == "__main__":
    key = jax.random.PRNGKey(0)
    nf, ni = 4, 8            # UnetBlock(nf=4, ni=8, innermost=True), input_c = nf
    N, H, W = 2, 16, 16

    k1, k2, k3, k4, k5 = jax.random.split(key, 5)
    x = jax.random.normal(k1, (N, nf, H, W), dtype=jnp.float32)
    w_down = jax.random.normal(k2, (ni, nf, 4, 4), dtype=jnp.float32) * 0.1
    w_up = jax.random.normal(k3, (ni, nf, 4, 4), dtype=jnp.float32) * 0.1
    gamma = 1.0 + 0.1 * jax.random.normal(k4, (nf,), dtype=jnp.float32)
    beta = 0.1 * jax.random.normal(k5, (nf,), dtype=jnp.float32)

    fwd = jax.jit(unet_block_innermost)
    out = jax.block_until_ready(fwd(x, w_down, w_up, gamma, beta))
    assert out.shape == (N, 2 * nf, H, W), out.shape

    ref = jax.block_until_ready(unet_block_ref(x, w_down, w_up, gamma, beta))
    np.testing.assert_allclose(np.asarray(out), np.asarray(ref), rtol=1e-4, atol=1e-4)

    print("KERNEL_OK")
</pallas_src>

<mosaic_0001>
module attributes {stable_mosaic.version = 11 : i64} {
  func.func @_down_matmul_kernel(%arg0: i32, %arg1: memref<8x64xf32, #tpu.memory_space<vmem>>, %arg2: memref<64x128xf32, #tpu.memory_space<vmem>>, %arg3: memref<8x128xf32, #tpu.memory_space<vmem>>) attributes {dimension_semantics = [#tpu.dimension_semantics<parallel>], iteration_bounds = array<i64: 1>, scalar_prefetch = 0 : i64, scratch_operands = 0 : i64, tpu.core_type = #tpu.core_type<tc>, window_params = [{pipeline_mode = #tpu.pipeline_mode<synchronous>, transform_indices = @transform_0, window_bounds = array<i64: 8, 64>}, {transform_indices = @transform_1, window_bounds = array<i64: 64, 128>}, {transform_indices = @transform_2, window_bounds = array<i64: 8, 128>}]} {
    %c0 = arith.constant 0 : index
    %c0_0 = arith.constant 0 : index
    %0 = vector.load %arg2[%c0, %c0_0] : memref<64x128xf32, #tpu.memory_space<vmem>>, vector<64x128xf32>
    %cst = arith.constant 0.000000e+00 : f32
    %1 = vector.broadcast %cst : f32 to vector<64x128xf32>
    %2 = arith.cmpf ogt, %0, %1 : vector<64x128xf32>
    %cst_1 = arith.constant 2.000000e-01 : f32
    %3 = vector.broadcast %cst_1 : f32 to vector<64x128xf32>
    %4 = arith.mulf %3, %0 : vector<64x128xf32>
    %5 = arith.select %2, %0, %4 : vector<64x128xi1>, vector<64x128xf32>
    %c0_2 = arith.constant 0 : index
    %c0_3 = arith.constant 0 : index
    %6 = vector.load %arg1[%c0_2, %c0_3] : memref<8x64xf32, #tpu.memory_space<vmem>>, vector<8x64xf32>
    %cst_4 = arith.constant dense<0.000000e+00> : vector<8x128xf32>
    %7 = tpu.matmul %6, %5, %cst_4 {dimension_numbers = #tpu.dot_dimension_numbers<[1], [0], [0], [1], [0, 0, 1, 1], [], []>} : vector<8x64xf32>, vector<64x128xf32>, vector<8x128xf32> -> vector<8x128xf32>
    %cst_5 = arith.constant 0.000000e+00 : f32
    %8 = vector.broadcast %cst_5 : f32 to vector<8x128xf32>
    %9 = arith.maximumf %7, %8 : vector<8x128xf32>
    %c0_6 = arith.constant 0 : index
    %c0_7 = arith.constant 0 : index
    %10 = vector.load %arg3[%c0_6, %c0_7] : memref<8x128xf32, #tpu.memory_space<vmem>>, vector<8x128xf32>
    tpu.vector_store %arg3[%c0_6, %c0_7], %9 {strides = array<i32>} : memref<8x128xf32, #tpu.memory_space<vmem>>, vector<8x128xf32>,
    return
  }
  func.func @transform_0(%arg0: i32) -> (i32, i32) {
    %c0_i32 = arith.constant 0 : i32
    %c0_i32_0 = arith.constant 0 : i32
    %c0_i32_1 = arith.constant 0 : i32
    return %c0_i32, %c0_i32_0 : i32, i32
  }
  func.func @transform_1(%arg0: i32) -> (i32, i32) {
    %c0_i32 = arith.constant 0 : i32
    %c0_i32_0 = arith.constant 0 : i32
    return %c0_i32, %arg0 : i32, i32
  }
  func.func @transform_2(%arg0: i32) -> (i32, i32) {
    %c0_i32 = arith.constant 0 : i32
    %c0_i32_0 = arith.constant 0 : i32
    return %c0_i32, %arg0 : i32, i32
  }
}

module attributes {stable_mosaic.version = 11 : i64} {
  func.func @_up_matmul_bn_kernel(%arg0: i32, %arg1: memref<16x32xf32, #tpu.memory_space<vmem>>, %arg2: memref<32x162xf32, #tpu.memory_space<vmem>>, %arg3: memref<2x162xi32, #tpu.memory_space<vmem>>, %arg4: memref<16x162xf32, #tpu.memory_space<vmem>>, %arg5: memref<4x2xf32, #tpu.memory_space<vmem>>) attributes {dimension_semantics = [#tpu.dimension_semantics<arbitrary>], iteration_bounds = array<i64: 1>, scalar_prefetch = 0 : i64, scratch_operands = 0 : i64, tpu.core_type = #tpu.core_type<tc>, window_params = [{pipeline_mode = #tpu.pipeline_mode<synchronous>, transform_indices = @transform_0, window_bounds = array<i64: 16, 32>}, {transform_indices = @transform_1, window_bounds = array<i64: 32, 162>}, {transform_indices = @transform_2, window_bounds = array<i64: 2, 162>}, {transform_indices = @transform_3, window_bounds = array<i64: 16, 162>}, {pipeline_mode = #tpu.pipeline_mode<synchronous>, transform_indices = @transform_4, window_bounds = array<i64: 4, 2>}]} {
    %c0_i32 = arith.constant 0 : i32
    %0 = arith.cmpi eq, %arg0, %c0_i32 : i32
    %1 = arith.extui %0 : i1 to i32
    %c0_i32_0 = arith.constant 0 : i32
    %2 = arith.cmpi ne, %1, %c0_i32_0 : i32
    scf.if %2 {
      %cst_54 = arith.constant 0.000000e+00 : f32
      %133 = vector.broadcast %cst_54 : f32 to vector<4x2xf32>
      %c0_55 = arith.constant 0 : index
      %c0_56 = arith.constant 0 : index
      %134 = vector.load %arg5[%c0_55, %c0_56] : memref<4x2xf32, #tpu.memory_space<vmem>>, vector<4x2xf32>
      tpu.vector_store %arg5[%c0_55, %c0_56], %133 {strides = array<i32>} : memref<4x2xf32, #tpu.memory_space<vmem>>, vector<4x2xf32>,
    } else {
    }
    %c0 = arith.constant 0 : index
    %c0_1 = arith.constant 0 : index
    %3 = vector.load %arg1[%c0, %c0_1] : memref<16x32xf32, #tpu.memory_space<vmem>>, vector<16x32xf32>
    %c0_2 = arith.constant 0 : index
    %c0_3 = arith.constant 0 : index
    %4 = vector.load %arg2[%c0_2, %c0_3] : memref<32x162xf32, #tpu.memory_space<vmem>>, vector<32x162xf32>
    %cst = arith.constant dense<0.000000e+00> : vector<16x162xf32>
    %5 = tpu.matmul %3, %4, %cst {dimension_numbers = #tpu.dot_dimension_numbers<[1], [0], [0], [1], [0, 0, 1, 1], [], []>} : vector<16x32xf32>, vector<32x162xf32>, vector<16x162xf32> -> vector<16x162xf32>
    %c0_4 = arith.constant 0 : index
    %c0_5 = arith.constant 0 : index
    %6 = vector.load %arg4[%c0_4, %c0_5] : memref<16x162xf32, #tpu.memory_space<vmem>>, vector<16x162xf32>
    tpu.vector_store %arg4[%c0_4, %c0_5], %5 {strides = array<i32>} : memref<16x162xf32, #tpu.memory_space<vmem>>, vector<16x162xf32>,
    %c162_i32 = arith.constant 162 : i32
    %7 = arith.muli %arg0, %c162_i32 : i32
    %8 = tpu.iota {dimensions = array<i32: 1>} : vector<1x162xi32>
    %9 = vector.broadcast %7 : i32 to vector<1x162xi32>
    %10 = arith.addi %9, %8 : vector<1x162xi32>
    %c162_i32_6 = arith.constant 162 : i32
    %11 = vector.broadcast %c162_i32_6 : i32 to vector<1x162xi32>
    %12 = arith.cmpi slt, %10, %11 : vector<1x162xi32>
    %c0_7 = arith.constant 0 : index
    %c0_8 = arith.constant 0 : index
    %13 = vector.load %arg3[%c0_7, %c0_8] : memref<2x162xi32, #tpu.memory_space<vmem>>, vector<1x162xi32>
    %c1 = arith.constant 1 : index
    %c0_9 = arith.constant 0 : index
    %14 = vector.load %arg3[%c1, %c0_9] : memref<2x162xi32, #tpu.memory_space<vmem>>, vector<1x162xi32>
    %cst_10 = arith.constant 0.000000e+00 : f32
    %15 = vector.broadcast %cst_10 : f32 to vector<4x1xf32>
    %cst_11 = arith.constant 0.000000e+00 : f32
    %16 = vector.broadcast %cst_11 : f32 to vector<4x1xf32>
    %c0_i32_12 = arith.constant 0 : i32
    %17 = vector.broadcast %c0_i32_12 : i32 to vector<1x162xi32>
    %18 = arith.addi %13, %17 : vector<1x162xi32>
    %c1_i32 = arith.constant 1 : i32
    %19 = vector.broadcast %c1_i32 : i32 to vector<1x162xi32>
    %20 = arith.cmpi sge, %18, %19 : vector<1x162xi32>
    %c0_i32_13 = arith.constant 0 : i32
    %21 = vector.broadcast %c0_i32_13 : i32 to vector<1x162xi32>
    %22 = arith.addi %13, %21 : vector<1x162xi32>
    %c8_i32 = arith.constant 8 : i32
    %23 = vector.broadcast %c8_i32 : i32 to vector<1x162xi32>
    %24 = arith.cmpi sle, %22, %23 : vector<1x162xi32>
    %25 = arith.andi %20, %24 : vector<1x162xi1>
    %c0_i32_14 = arith.constant 0 : i32
    %26 = vector.broadcast %c0_i32_14 : i32 to vector<1x162xi32>
    %27 = arith.addi %14, %26 : vector<1x162xi32>
    %c1_i32_15 = arith.constant 1 : i32
    %28 = vector.broadcast %c1_i32_15 : i32 to vector<1x162xi32>
    %29 = arith.cmpi sge, %27, %28 : vector<1x162xi32>
    %c0_i32_16 = arith.constant 0 : i32
    %30 = vector.broadcast %c0_i32_16 : i32 to vector<1x162xi32>
    %31 = arith.addi %14, %30 : vector<1x162xi32>
    %c8_i32_17 = arith.constant 8 : i32
    %32 = vector.broadcast %c8_i32_17 : i32 to vector<1x162xi32>
    %33 = arith.cmpi sle, %31, %32 : vector<1x162xi32>
    %34 = arith.andi %29, %33 : vector<1x162xi1>
    %35 = arith.andi %25, %34 : vector<1x162xi1>
    %36 = arith.andi %35, %12 : vector<1x162xi1>
    %37 = vector.extract_strided_slice %5 {offsets = [0, 0], sizes = [4, 162], strides = [1, 1]} : vector<16x162xf32> to vector<4x162xf32>
    %cst_18 = arith.constant 0.000000e+00 : f32
    %38 = vector.shape_cast %36 : vector<1x162xi1> to vector<1x162xi1>
    %39 = vector.broadcast %38 : vector<1x162xi1> to vector<4x162xi1>
    %40 = vector.broadcast %cst_18 : f32 to vector<4x162xf32>
    %41 = arith.select %39, %37, %40 : vector<4x162xi1>, vector<4x162xf32>
    %cst_19 = arith.constant dense<0.000000e+00> : vector<4xf32>
    %42 = vector.multi_reduction <add>, %41, %cst_19 [1] : vector<4x162xf32> to vector<4xf32>
    %43 = vector.shape_cast %42 : vector<4xf32> to vector<4x1xf32>
    %44 = arith.addf %15, %43 : vector<4x1xf32>
    %45 = arith.mulf %41, %41 : vector<4x162xf32>
    %cst_20 = arith.constant dense<0.000000e+00> : vector<4xf32>
    %46 = vector.multi_reduction <add>, %45, %cst_20 [1] : vector<4x162xf32> to vector<4xf32>
    %47 = vector.shape_cast %46 : vector<4xf32> to vector<4x1xf32>
    %48 = arith.addf %16, %47 : vector<4x1xf32>
    %c1_i32_21 = arith.constant 1 : i32
    %49 = vector.broadcast %c1_i32_21 : i32 to vector<1x162xi32>
    %50 = arith.addi %14, %49 : vector<1x162xi32>
    %c1_i32_22 = arith.constant 1 : i32
    %51 = vector.broadcast %c1_i32_22 : i32 to vector<1x162xi32>
    %52 = arith.cmpi sge, %50, %51 : vector<1x162xi32>
    %c1_i32_23 = arith.constant 1 : i32
    %53 = vector.broadcast %c1_i32_23 : i32 to vector<1x162xi32>
    %54 = arith.addi %14, %53 : vector<1x162xi32>
    %c8_i32_24 = arith.constant 8 : i32
    %55 = vector.broadcast %c8_i32_24 : i32 to vector<1x162xi32>
    %56 = arith.cmpi sle, %54, %55 : vector<1x162xi32>
    %57 = arith.andi %52, %56 : vector<1x162xi1>
    %58 = arith.andi %25, %57 : vector<1x162xi1>
    %59 = arith.andi %58, %12 : vector<1x162xi1>
    %60 = vector.extract_strided_slice %5 {offsets = [4, 0], sizes = [4, 162], strides = [1, 1]} : vector<16x162xf32> to vector<4x162xf32>
    %cst_25 = arith.constant 0.000000e+00 : f32
    %61 = vector.shape_cast %59 : vector<1x162xi1> to vector<1x162xi1>
    %62 = vector.broadcast %61 : vector<1x162xi1> to vector<4x162xi1>
    %63 = vector.broadcast %cst_25 : f32 to vector<4x162xf32>
    %64 = arith.select %62, %60, %63 : vector<4x162xi1>, vector<4x162xf32>
    %cst_26 = arith.constant dense<0.000000e+00> : vector<4xf32>
    %65 = vector.multi_reduction <add>, %64, %cst_26 [1] : vector<4x162xf32> to vector<4xf32>
    %66 = vector.shape_cast %65 : vector<4xf32> to vector<4x1xf32>
    %67 = arith.addf %44, %66 : vector<4x1xf32>
    %68 = arith.mulf %64, %64 : vector<4x162xf32>
    %cst_27 = arith.constant dense<0.000000e+00> : vector<4xf32>
    %69 = vector.multi_reduction <add>, %68, %cst_27 [1] : vector<4x162xf32> to vector<4xf32>
    %70 = vector.shape_cast %69 : vector<4xf32> to vector<4x1xf32>
    %71 = arith.addf %48, %70 : vector<4x1xf32>
    %c1_i32_28 = arith.constant 1 : i32
    %72 = vector.broadcast %c1_i32_28 : i32 to vector<1x162xi32>
    %73 = arith.addi %13, %72 : vector<1x162xi32>
    %c1_i32_29 = arith.constant 1 : i32
    %74 = vector.broadcast %c1_i32_29 : i32 to vector<1x162xi32>
    %75 = arith.cmpi sge, %73, %74 : vector<1x162xi32>
    %c1_i32_30 = arith.constant 1 : i32
    %76 = vector.broadcast %c1_i32_30 : i32 to vector<1x162xi32>
    %77 = arith.addi %13, %76 : vector<1x162xi32>
    %c8_i32_31 = arith.constant 8 : i32
    %78 = vector.broadcast %c8_i32_31 : i32 to vector<1x162xi32>
    %79 = arith.cmpi sle, %77, %78 : vector<1x162xi32>
    %80 = arith.andi %75, %79 : vector<1x162xi1>
    %c0_i32_32 = arith.constant 0 : i32
    %81 = vector.broadcast %c0_i32_32 : i32 to vector<1x162xi32>
    %82 = arith.addi %14, %81 : vector<1x162xi32>
    %c1_i32_33 = arith.constant 1 : i32
    %83 = vector.broadcast %c1_i32_33 : i32 to vector<1x162xi32>
    %84 = arith.cmpi sge, %82, %83 : vector<1x162xi32>
    %c0_i32_34 = arith.constant 0 : i32
    %85 = vector.broadcast %c0_i32_34 : i32 to vector<1x162xi32>
    %86 = arith.addi %14, %85 : vector<1x162xi32>
    %c8_i32_35 = arith.constant 8 : i32
    %87 = vector.broadcast %c8_i32_35 : i32 to vector<1x162xi32>
    %88 = arith.cmpi sle, %86, %87 : vector<1x162xi32>
    %89 = arith.andi %84, %88 : vector<1x162xi1>
    %90 = arith.andi %80, %89 : vector<1x162xi1>
    %91 = arith.andi %90, %12 : vector<1x162xi1>
    %92 = vector.extract_strided_slice %5 {offsets = [8, 0], sizes = [4, 162], strides = [1, 1]} : vector<16x162xf32> to vector<4x162xf32>
    %cst_36 = arith.constant 0.000000e+00 : f32
    %93 = vector.shape_cast %91 : vector<1x162xi1> to vector<1x162xi1>
    %94 = vector.broadcast %93 : vector<1x162xi1> to vector<4x162xi1>
    %95 = vector.broadcast %cst_36 : f32 to vector<4x162xf32>
    %96 = arith.select %94, %92, %95 : vector<4x162xi1>, vector<4x162xf32>
    %cst_37 = arith.constant dense<0.000000e+00> : vector<4xf32>
    %97 = vector.multi_reduction <add>, %96, %cst_37 [1] : vector<4x162xf32> to vector<4xf32>
    %98 = vector.shape_cast %97 : vector<4xf32> to vector<4x1xf32>
    %99 = arith.addf %67, %98 : vector<4x1xf32>
    %100 = arith.mulf %96, %96 : vector<4x162xf32>
    %cst_38 = arith.constant dense<0.000000e+00> : vector<4xf32>
    %101 = vector.multi_reduction <add>, %100, %cst_38 [1] : vector<4x162xf32> to vector<4xf32>
    %102 = vector.shape_cast %101 : vector<4xf32> to vector<4x1xf32>
    %103 = arith.addf %71, %102 : vector<4x1xf32>
    %c1_i32_39 = arith.constant 1 : i32
    %104 = vector.broadcast %c1_i32_39 : i32 to vector<1x162xi32>
    %105 = arith.addi %14, %104 : vector<1x162xi32>
    %c1_i32_40 = arith.constant 1 : i32
    %106 = vector.broadcast %c1_i32_40 : i32 to vector<1x162xi32>
    %107 = arith.cmpi sge, %105, %106 : vector<1x162xi32>
    %c1_i32_41 = arith.constant 1 : i32
    %108 = vector.broadcast %c1_i32_41 : i32 to vector<1x162xi32>
    %109 = arith.addi %14, %108 : vector<1x162xi32>
    %c8_i32_42 = arith.constant 8 : i32
    %110 = vector.broadcast %c8_i32_42 : i32 to vector<1x162xi32>
    %111 = arith.cmpi sle, %109, %110 : vector<1x162xi32>
    %112 = arith.andi %107, %111 : vector<1x162xi1>
    %113 = arith.andi %80, %112 : vector<1x162xi1>
    %114 = arith.andi %113, %12 : vector<1x162xi1>
    %115 = vector.extract_strided_slice %5 {offsets = [12, 0], sizes = [4, 162], strides = [1, 1]} : vector<16x162xf32> to vector<4x162xf32>
    %cst_43 = arith.constant 0.000000e+00 : f32
    %116 = vector.shape_cast %114 : vector<1x162xi1> to vector<1x162xi1>
    %117 = vector.broadcast %116 : vector<1x162xi1> to vector<4x162xi1>
    %118 = vector.broadcast %cst_43 : f32 to vector<4x162xf32>
    %119 = arith.select %117, %115, %118 : vector<4x162xi1>, vector<4x162xf32>
    %cst_44 = arith.constant dense<0.000000e+00> : vector<4xf32>
    %120 = vector.multi_reduction <add>, %119, %cst_44 [1] : vector<4x162xf32> to vector<4xf32>
    %121 = vector.shape_cast %120 : vector<4xf32> to vector<4x1xf32>
    %122 = arith.addf %99, %121 : vector<4x1xf32>
    %123 = arith.mulf %119, %119 : vector<4x162xf32>
    %cst_45 = arith.constant dense<0.000000e+00> : vector<4xf32>
    %124 = vector.multi_reduction <add>, %123, %cst_45 [1] : vector<4x162xf32> to vector<4xf32>
    %125 = vector.shape_cast %124 : vector<4xf32> to vector<4x1xf32>
    %126 = arith.addf %103, %125 : vector<4x1xf32>
    %c0_46 = arith.constant 0 : index
    %c0_47 = arith.constant 0 : index
    %127 = vector.load %arg5[%c0_46, %c0_47] : memref<4x2xf32, #tpu.memory_space<vmem>>, vector<4x1xf32>
    %128 = arith.addf %127, %122 : vector<4x1xf32>
    %c0_48 = arith.constant 0 : index
    %c0_49 = arith.constant 0 : index
    %129 = vector.load %arg5[%c0_48, %c0_49] : memref<4x2xf32, #tpu.memory_space<vmem>>, vector<4x1xf32>
    tpu.vector_store %arg5[%c0_48, %c0_49], %128 {strides = array<i32>} : memref<4x2xf32, #tpu.memory_space<vmem>>, vector<4x1xf32>,
    %c0_50 = arith.constant 0 : index
    %c1_51 = arith.constant 1 : index
    %130 = vector.load %arg5[%c0_50, %c1_51] : memref<4x2xf32, #tpu.memory_space<vmem>>, vector<4x1xf32>
    %131 = arith.addf %130, %126 : vector<4x1xf32>
    %c0_52 = arith.constant 0 : index
    %c1_53 = arith.constant 1 : index
    %132 = vector.load %arg5[%c0_52, %c1_53] : memref<4x2xf32, #tpu.memory_space<vmem>>, vector<4x1xf32>
    tpu.vector_store %arg5[%c0_52, %c1_53], %131 {strides = array<i32>} : memref<4x2xf32, #tpu.memory_space<vmem>>, vector<4x1xf32>,
    return
  }
  func.func @transform_0(%arg0: i32) -> (i32, i32) {
    %c0_i32 = arith.constant 0 : i32
    %c0_i32_0 = arith.constant 0 : i32
    %c0_i32_1 = arith.constant 0 : i32
    return %c0_i32, %c0_i32_0 : i32, i32
  }
  func.func @transform_1(%arg0: i32) -> (i32, i32) {
    %c0_i32 = arith.constant 0 : i32
    %c0_i32_0 = arith.constant 0 : i32
    return %c0_i32, %arg0 : i32, i32
  }
  func.func @transform_2(%arg0: i32) -> (i32, i32) {
    %c0_i32 = arith.constant 0 : i32
    %c0_i32_0 = arith.constant 0 : i32
    return %c0_i32, %arg0 : i32, i32
  }
  func.func @transform_3(%arg0: i32) -> (i32, i32) {
    %c0_i32 = arith.constant 0 : i32
    %c0_i32_0 = arith.constant 0 : i32
    return %c0_i32, %arg0 : i32, i32
  }
  func.func @transform_4(%arg0: i32) -> (i32, i32) {
    %c0_i32 = arith.constant 0 : i32
    %c0_i32_0 = arith.constant 0 : i32
    %c0_i32_1 = arith.constant 0 : i32
    return %c0_i32, %c0_i32_0 : i32, i32
  }
}

</mosaic_0001>

<llo_original>
// kernel: unet_block_innermost.2
$region0: #{unet_block_innermost.2}
  #allocation0 [shape = 'u32[]', space=smem, size = 0x4, offset = 0x4, fixed_abs, tag = 'smem constant byte address 0x4 - core index']
  #allocation1 [shape = 'u32[144,128]{1,0:T(1,128)}', space=vmem, size = 0x12000, scoped, tag = 'internal scratch']
  %s0 = inlined_call_operand.vmem [shape: f32[8,64], index: 0, kind: input, shape index: {}]
  %s1 = inlined_call_operand.vmem [shape: f32[64,128], index: 1, kind: input, shape index: {}]
  %s2 = inlined_call_operand.vmem [shape: f32[8,128], index: 2, kind: output, shape index: {}]
  %s3 = sld [smem:[#allocation0]]
  $region18: #{unet_block_innermost.2} parent=0
    _
  %s5 = ssub.s32 1, %s3
  %s6 = scalar_select 0, %s5, %s3
  // Predicated region
  $region2: #{unet_block_innermost.2} parent=0 // pred_check
    _
  $region3: #{unet_block_innermost.2} parent=0 // pred_check_branch
    %8 = sbr.rel (0) target = $region5
  $region4: #{unet_block_innermost.2} parent=0 // pred_region
    _
  $region5: #{unet_block_innermost.2} parent=0 // pred_fallthru
    _
  // Predicated region
  $region6: #{unet_block_innermost.2} parent=0 // pred_check
    _
  $region7: #{unet_block_innermost.2} parent=0 // pred_check_branch
    %10 = sbr.rel (0) target = $region9
  $region8: #{unet_block_innermost.2} parent=0 // pred_region
    _
  $region9: #{unet_block_innermost.2} parent=0 // pred_fallthru
    _
  %v11 = vld [vmem:[%s1] sm:$0xff]
  %v12 = vld [vmem:[%s1 + $0x8] sm:$0xff]
  %v13 = vld [vmem:[%s1 + $0x10] sm:$0xff]
  %v14 = vld [vmem:[%s1 + $0x18] sm:$0xff]
  %v15 = vld [vmem:[%s1 + $0x20] sm:$0xff]
  %v16 = vld [vmem:[%s1 + $0x28] sm:$0xff]
  %v17 = vld [vmem:[%s1 + $0x30] sm:$0xff]
  %v18 = vld [vmem:[%s1 + $0x38] sm:$0xff]
  %vm19 = vcmp.gt.f32.partialorder %v11, 0.0
  %vm20 = vcmp.gt.f32.partialorder %v12, 0.0
  %vm21 = vcmp.gt.f32.partialorder %v13, 0.0
  %vm22 = vcmp.gt.f32.partialorder %v14, 0.0
  %vm23 = vcmp.gt.f32.partialorder %v15, 0.0
  %vm24 = vcmp.gt.f32.partialorder %v16, 0.0
  %vm25 = vcmp.gt.f32.partialorder %v17, 0.0
  %vm26 = vcmp.gt.f32.partialorder %v18, 0.0
  %v27 = vmul.f32 %v11, 0.2
  %v28 = vmul.f32 %v12, 0.2
  %v29 = vmul.f32 %v13, 0.2
  %v30 = vmul.f32 %v14, 0.2
  %v31 = vmul.f32 %v15, 0.2
  %v32 = vmul.f32 %v16, 0.2
  %v33 = vmul.f32 %v17, 0.2
  %v34 = vmul.f32 %v18, 0.2
  %v35 = vsel %vm19, %v11, %v27
  %v36 = vsel %vm20, %v12, %v28
  %v37 = vsel %vm21, %v13, %v29
  %v38 = vsel %vm22, %v14, %v30
  %v39 = vsel %vm23, %v15, %v31
  %v40 = vsel %vm24, %v16, %v32
  %v41 = vsel %vm25, %v17, %v33
  %v42 = vsel %vm26, %v18, %v34
  %v43 = vld [vmem:[%s0] sm:$0xff]
  %vm44 = vcmask 523264
  %v46 = vsel %vm44, %v43, 0
  %48 = vmatprep.subr.mxu0 0.0
  %49 = vmatpush1.msra.mxu0 %v35
  %50 = vmatprep.subr.mxu0 0.0
  %51 = vmatpush1.msra.mxu0 %v36
  %52 = vmatprep.subr.mxu0 0.0
  %53 = vmatpush1.msra.mxu0 %v37
  %54 = vmatprep.subr.mxu0 0.0
  %55 = vmatpush1.msra.mxu0 %v38
  %56 = vmatprep.subr.mxu0 0.0
  %57 = vmatpush1.msra.mxu0 %v39
  %58 = vmatprep.subr.mxu0 0.0
  %59 = vmatpush1.msra.mxu0 %v40
  %60 = vmatprep.subr.mxu0 0.0
  %61 = vmatpush1.msra.mxu0 %v41
  %62 = vmatprep.subr.mxu0 0.0
  %63 = vmatpush1.msra.mxu0 %v42
  %64 = vmatprep.subr.mxu0 0.0
  %65 = vmatpush1.msra.mxu0 0.0
  %66 = vmatprep.subr.mxu0 0.0
  %67 = vmatpush1.msra.mxu0 0.0
  %68 = vmatprep.subr.mxu0 0.0
  %69 = vmatpush1.msra.mxu0 0.0
  %70 = vmatprep.subr.mxu0 0.0
  %71 = vmatpush1.msra.mxu0 0.0
  %72 = vmatprep.subr.mxu0 0.0
  %73 = vmatpush1.msra.mxu0 0.0
  %74 = vmatprep.subr.mxu0 0.0
  %75 = vmatpush1.msra.mxu0 0.0
  %76 = vmatprep.subr.mxu0 0.0
  %77 = vmatpush1.msra.mxu0 0.0
  %78 = vmatprep.subr.mxu0 0.0
  %79 = vmatpush1.msra.mxu0 0.0
  %80 = vmatprep.subr.mxu0 0.0
  %81 = vmatpush1.msra.mxu0 0.0
  %82 = vmatprep.subr.mxu0 0.0
  %83 = vmatpush1.msra.mxu0 0.0
  %84 = vmatprep.subr.mxu0 0.0
  %85 = vmatpush1.msra.mxu0 0.0
  %86 = vmatprep.subr.mxu0 0.0
  %87 = vmatpush1.msra.mxu0 0.0
  %88 = vmatprep.subr.mxu0 0.0
  %89 = vmatpush1.msra.mxu0 0.0
  %90 = vmatprep.subr.mxu0 0.0
  %91 = vmatpush1.msra.mxu0 0.0
  %92 = vmatprep.subr.mxu0 0.0
  %93 = vmatpush1.msra.mxu0 0.0
  %94 = vmatprep.subr.mxu0 0.0
  %95 = vmatpush1.msra.mxu0 0.0
  %96 = vmatprep.subr.mxu0 0.0
  %97 = vmatpush1.msra.mxu0 0.0
  %98 = vmatprep.subr.mxu0 0.0
  %99 = vmatpush1.msra.mxu0 0.0
  %100 = vmatprep.subr.mxu0 0.0
  %101 = vmatpush1.msra.mxu0 0.0
  %102 = vmatprep.subr.mxu0 0.0
  %103 = vmatpush1.msra.mxu0 0.0
  %104 = vmatprep.subr.mxu0 0.0
  %105 = vmatpush1.msra.mxu0 0.0
  %106 = vmatprep.subr.mxu0 0.0
  %107 = vmatpush1.msra.mxu0 0.0
  %108 = vmatprep.subr.mxu0 0.0
  %109 = vmatpush1.msra.mxu0 0.0
  %110 = vmatprep.subr.mxu0 0.0
  %111 = vmatpush1.msra.mxu0 0.0
  %112 = vmatprep.mubr.f32.mxu0 0.0
  %113 = vmatmul.mubr.f32.gmra.mrb[0].mxu0 %v46
  %v114 = vpop.f32.mrb[0].mxu0
  %v115 = vadd.f32 0.0, %v114
  %v116 = vpop.f32.mrb[0].mxu0
  %117 = vdwg.mxu0
  %v118 = vmax.f32 %v115, 0.0
  %119 = vst [vmem:[%s2] sm:$0xff] %v118
  // Predicated region
  $region10: #{unet_block_innermost.2} parent=0 // pred_check
    _
  $region11: #{unet_block_innermost.2} parent=0 // pred_check_branch
    %121 = sbr.rel (0) target = $region13
  $region12: #{unet_block_innermost.2} parent=0 // pred_region
    _
  $region13: #{unet_block_innermost.2} parent=0 // pred_fallthru
    _
  // Predicated region
  $region14: #{unet_block_innermost.2} parent=0 // pred_check
    _
  $region15: #{unet_block_innermost.2} parent=0 // pred_check_branch
    %123 = sbr.rel (0) target = $region17
  $region16: #{unet_block_innermost.2} parent=0 // pred_region
    _
  $region17: #{unet_block_innermost.2} parent=0 // pred_fallthru
    _

// kernel: unet_block_innermost.3
$region0: #{unet_block_innermost.3}
  #allocation0 [shape = 'u32[]', space=smem, size = 0x4, offset = 0x4, fixed_abs, tag = 'smem constant byte address 0x4 - core index']
  #allocation1 [shape = 'u32[144,128]{1,0:T(1,128)}', space=vmem, size = 0x12000, scoped, tag = 'internal scratch']
  %s0 = inlined_call_operand.vmem [shape: f32[16,32], index: 0, kind: input, shape index: {}]
  %s1 = inlined_call_operand.vmem [shape: f32[32,162], index: 1, kind: input, shape index: {}]
  %s2 = inlined_call_operand.vmem [shape: s32[2,162], index: 2, kind: input, shape index: {}]
  %s3 = inlined_call_operand.vmem [shape: f32[16,162], index: 3, kind: output, shape index: {0}]
  %s4 = inlined_call_operand.vmem [shape: f32[4,2], index: 4, kind: output, shape index: {1}]
  %5 = xla_tuple %s3, %s4
  %s6 = sld [smem:[#allocation0]]
  $region34: #{unet_block_innermost.3} parent=0
    _
  %s8 = ssub.s32 1, %s6
  %s9 = scalar_select 0, %s8, %s6
  // Predicated region
  $region2: #{unet_block_innermost.3} parent=0 // pred_check
    _
  $region3: #{unet_block_innermost.3} parent=0 // pred_check_branch
    %11 = sbr.rel (0) target = $region5
  $region4: #{unet_block_innermost.3} parent=0 // pred_region
    _
  $region5: #{unet_block_innermost.3} parent=0 // pred_fallthru
    _
  // Predicated region
  $region6: #{unet_block_innermost.3} parent=0 // pred_check
    _
  $region7: #{unet_block_innermost.3} parent=0 // pred_check_branch
    %13 = sbr.rel (0) target = $region9
  $region8: #{unet_block_innermost.3} parent=0 // pred_region
    _
  $region9: #{unet_block_innermost.3} parent=0 // pred_fallthru
    _
  // Predicated region
  $region10: #{unet_block_innermost.3} parent=0 // pred_check
    _
  $region11: #{unet_block_innermost.3} parent=0 // pred_check_branch
    %15 = sbr.rel (0) target = $region13
  $region12: #{unet_block_innermost.3} parent=0 // pred_region
    _
  $region13: #{unet_block_innermost.3} parent=0 // pred_fallthru
    _
  %p16 = scmp.eq.s32.totalorder 0, 0
  // Predicated region
  $region14: #{unet_block_innermost.3} parent=0 // pred_check
    %p17 = pneg %p16
  $region15: #{unet_block_innermost.3} parent=0 // pred_check_branch
    %19 = sbr.rel (%p17) target = $region17
  $region16: #{unet_block_innermost.3} parent=0 // pred_region
    %vm20 = vcmask 11264
    %21 = vst.msk [vmem:[%s4] sm:$0xf] %vm20, 0.0
  $region17: #{unet_block_innermost.3} parent=0 // pred_fallthru
    _
  %v22 = vld [vmem:[%s0] sm:$0xff]
  %v23 = vld [vmem:[%s0 + $0x8] sm:$0xff]
  %v24 = vld [vmem:[%s1] sm:$0xff]
  %v25 = vld [vmem:[%s1 + $0x8] sm:$0xff]
  %v26 = vld [vmem:[%s1 + $0x10] sm:$0xff]
  %v27 = vld [vmem:[%s1 + $0x18] sm:$0xff]
  %v28 = vld [vmem:[%s1 + $0x20] sm:$0xff]
  %v29 = vld [vmem:[%s1 + $0x28] sm:$0xff]
  %v30 = vld [vmem:[%s1 + $0x30] sm:$0xff]
  %v31 = vld [vmem:[%s1 + $0x38] sm:$0xff]
  %vm32 = vcmask 261120
  %v34 = vsel %vm32, %v22, 0
  %v37 = vsel %vm32, %v23, 0
  %39 = vmatprep.subr.mxu0 %v25
  %40 = vmatpush1.msra.mxu0 %v24
  %41 = vmatprep.subr.mxu0 %v27
  %42 = vmatpush1.msra.mxu0 %v26
  %43 = vmatprep.subr.mxu0 %v29
  %44 = vmatpush1.msra.mxu0 %v28
  %45 = vmatprep.subr.mxu0 %v31
  %46 = vmatpush1.msra.mxu0 %v30
  %47 = vmatprep.subr.mxu0 0.0
  %48 = vmatpush1.msra.mxu0 0.0
  %49 = vmatprep.subr.mxu0 0.0
  %50 = vmatpush1.msra.mxu0 0.0
  %51 = vmatprep.subr.mxu0 0.0
  %52 = vmatpush1.msra.mxu0 0.0
  %53 = vmatprep.subr.mxu0 0.0
  %54 = vmatpush1.msra.mxu0 0.0
  %55 = vmatprep.subr.mxu0 0.0
  %56 = vmatpush1.msra.mxu0 0.0
  %57 = vmatprep.subr.mxu0 0.0
  %58 = vmatpush1.msra.mxu0 0.0
  %59 = vmatprep.subr.mxu0 0.0
  %60 = vmatpush1.msra.mxu0 0.0
  %61 = vmatprep.subr.mxu0 0.0
  %62 = vmatpush1.msra.mxu0 0.0
  %63 = vmatprep.subr.mxu0 0.0
  %64 = vmatpush1.msra.mxu0 0.0
  %65 = vmatprep.subr.mxu0 0.0
  %66 = vmatpush1.msra.mxu0 0.0
  %67 = vmatprep.subr.mxu0 0.0
  %68 = vmatpush1.msra.mxu0 0.0
  %69 = vmatprep.subr.mxu0 0.0
  %70 = vmatpush1.msra.mxu0 0.0
  %71 = vmatprep.subr.mxu0 0.0
  %72 = vmatpush1.msra.mxu0 0.0
  %73 = vmatprep.subr.mxu0 0.0
  %74 = vmatpush1.msra.mxu0 0.0
  %75 = vmatprep.subr.mxu0 0.0
  %76 = vmatpush1.msra.mxu0 0.0
  %77 = vmatprep.subr.mxu0 0.0
  %78 = vmatpush1.msra.mxu0 0.0
  %79 = vmatprep.subr.mxu0 0.0
  %80 = vmatpush1.msra.mxu0 0.0
  %81 = vmatprep.subr.mxu0 0.0
  %82 = vmatpush1.msra.mxu0 0.0
  %83 = vmatprep.subr.mxu0 0.0
  %84 = vmatpush1.msra.mxu0 0.0
  %85 = vmatprep.subr.mxu0 0.0
  %86 = vmatpush1.msra.mxu0 0.0
  %87 = vmatprep.subr.mxu0 0.0
  %88 = vmatpush1.msra.mxu0 0.0
  %89 = vmatprep.subr.mxu0 0.0
  %90 = vmatpush1.msra.mxu0 0.0
  %91 = vmatprep.subr.mxu0 0.0
  %92 = vmatpush1.msra.mxu0 0.0
  %93 = vmatprep.subr.mxu0 0.0
  %94 = vmatpush1.msra.mxu0 0.0
  %95 = vmatprep.subr.mxu0 0.0
  %96 = vmatpush1.msra.mxu0 0.0
  %97 = vmatprep.subr.mxu0 0.0
  %98 = vmatpush1.msra.mxu0 0.0
  %99 = vmatprep.subr.mxu0 0.0
  %100 = vmatpush1.msra.mxu0 0.0
  %101 = vmatprep.subr.mxu0 0.0
  %102 = vmatpush1.msra.mxu0 0.0
  %103 = vmatprep.mubr.f32.mxu0 0.0
  %104 = vmatmul.mubr.f32.gmra.mrb[0].mxu0 %v34
  %v105 = vpop.f32.mrb[0].mxu0
  %v106 = vadd.f32 0.0, %v105
  %v107 = vpop.f32.mrb[0].mxu0
  %v108 = vadd.f32 0.0, %v107
  %109 = vmatprep.mubr.f32.mxu0 0.0
  %110 = vmatmul.mubr.f32.gmra.mrb[0].mxu0 %v37
  %v111 = vpop.f32.mrb[0].mxu0
  %v112 = vadd.f32 0.0, %v111
  %v113 = vpop.f32.mrb[0].mxu0
  %v114 = vadd.f32 0.0, %v113
  %115 = vdwg.mxu0
  %116 = vst [vmem:[%s3] sm:$0xff] %v106
  %vm117 = vcmask 277504
  %118 = vst.msk [vmem:[%s3 + $0x8] sm:$0xff] %vm117, %v108
  %119 = vst [vmem:[%s3 + $0x10] sm:$0xff] %v112
  %120 = vst.msk [vmem:[%s3 + $0x18] sm:$0xff] %vm117, %v114
  %s121 = smul.u32 0, 162
  %v122 = vlaneseq
  %v123 = vand.u32 %v122, 127
  %v124 = vadd.s32 %v123, 128
  %v125 = vstv %s121
  %v126 = vadd.s32 %v125, %v123
  %v127 = vadd.s32 %v125, %v124
  %vm128 = vcmp.lt.s32.totalorder %v126, 162
  %vm129 = vcmp.lt.s32.totalorder %v127, 162
  %v130 = vld [vmem:[%s2] ss:$2 sm:$0x3]
  %s131 = scalar_lea.vmem %s2, 1
  %v132 = vld [vmem:[%s131] ss:$2 sm:$0x3]
  %vm133 = vcmp.ge.s32.totalorder %v130, 1
  %vm134 = vcmp.le.s32.totalorder %v130, 8
  %vm135 = vmand %vm133, %vm134
  %vm136 = vcmp.ge.s32.totalorder %v132, 1
  %vm137 = vcmp.le.s32.totalorder %v132, 8
  %vm138 = vmand %vm136, %vm137
  %vm139 = vmand %vm135, %vm138
  %v140 = vsel %vm128, 1, 0
  %v141 = vsel %vm129, 1, 0
  %v142 = vcombine.low %v140, %v141
  %v144 = vunpack.c.l.s4 1966171168
  %v145 = vunpack.c.0.s8 %v144
  %v146 = vlaneseq
  %v147 = vshrl.u32 %v146, 7
  %v148 = vsub.s32 %v145, %v147
  %v149 = vrot.slane %v142, %v148
  %v151 = vunpack.c.l.s4 1966171168
  %v152 = vunpack.c.0.s8 %v151
  %v153 = vlaneseq
  %v154 = vshrl.u32 %v153, 7
  %v155 = vsub.s32 %v152, %v154
  %v156 = vrot.slane %v149, %v155
  %vm157 = vcmp.ne.s32.totalorder %v156, 0
  %vm158 = vmand %vm139, %vm157
  %v159 = vsel %vm158, 1, 0
  %v160 = vlaneseq
  %v161 = vshrl.u32 %v160, 7
  %v162 = vsub.s32 0, %v161
  %v163 = vrot.slane %v159, %v162
  %v164 = vlaneseq
  %v165 = vshrl.u32 %v164, 7
  %v166 = vsub.s32 1, %v165
  %v167 = vrot.slane %v159, %v166
  %vm168 = vcmp.eq.s32.totalorder %v163, 1
  %vm169 = vcmp.eq.s32.totalorder %v167, 1
  %v170 = vsel %vm168, %v106, 0.0
  %v171 = vsel %vm169, %v108, 0.0
  %vm172 = vcmask 1043456
  %v173 = vsel %vm172, %v170, 0.0
  %vm174 = vcmask 273408
  %v175 = vsel %vm174, %v171, 0.0
  %v176 = vadd.f32 %v173, %v175
  %177 = vadd.xlane.f32.xlu0 %v176
  %v178 = vpop.xlane.xlu0 %177
  %v179 = vadd.f32 %v178, 0.0
  %v180 = vmul.f32 %v170, %v170
  %v181 = vmul.f32 %v171, %v171
  %v182 = vsel %vm172, %v180, 0.0
  %v183 = vsel %vm174, %v181, 0.0
  %v184 = vadd.f32 %v182, %v183
  %185 = vadd.xlane.f32.xlu0 %v184
  %v186 = vpop.xlane.xlu0 %185
  %v187 = vadd.f32 %v186, 0.0
  %v188 = vadd.s32 %v132, 1
  %vm189 = vcmp.ge.s32.totalorder %v188, 1
  %vm190 = vcmp.le.s32.totalorder %v188, 8
  %vm191 = vmand %vm189, %vm190
  %vm192 = vmand %vm135, %vm191
  %vm193 = vmand %vm192, %vm157
  %v194 = vsel %vm193, 1, 0
  %v195 = vlaneseq
  %v196 = vshrl.u32 %v195, 7
  %v197 = vsub.s32 0, %v196
  %v198 = vrot.slane %v194, %v197
  %v199 = vlaneseq
  %v200 = vshrl.u32 %v199, 7
  %v201 = vsub.s32 1, %v200
  %v202 = vrot.slane %v194, %v201
  %vm203 = vcmp.eq.s32.totalorder %v198, 1
  %vm204 = vcmp.eq.s32.totalorder %v202, 1
  %v205 = vsel %vm203, %v106, 0.0
  %v206 = vsel %vm204, %v108, 0.0
  %vm207 = vcmask 1047556
  %v208 = vsel %vm207, %v205, 0.0
  %vm209 = vcmask 277508
  %v210 = vsel %vm209, %v206, 0.0
  %v211 = vadd.f32 %v208, %v210
  %212 = vadd.xlane.f32.xlu0 %v211
  %v213 = vpop.xlane.xlu0 %212
  %v215 = vrot.slane %v213, 4
  %v217 = vadd.f32 %v179, %v215
  %v218 = vmul.f32 %v205, %v205
  %v219 = vmul.f32 %v206, %v206
  %v220 = vsel %vm207, %v218, 0.0
  %v221 = vsel %vm209, %v219, 0.0
  %v222 = vadd.f32 %v220, %v221
  %223 = vadd.xlane.f32.xlu0 %v222
  %v224 = vpop.xlane.xlu0 %223
  %v226 = vrot.slane %v224, 4
  %v228 = vadd.f32 %v187, %v226
  %v229 = vadd.s32 %v130, 1
  %vm230 = vcmp.ge.s32.totalorder %v229, 1
  %vm231 = vcmp.le.s32.totalorder %v229, 8
  %vm232 = vmand %vm230, %vm231
  %vm233 = vmand %vm232, %vm138
  %vm234 = vmand %vm233, %vm157
  %v235 = vsel %vm234, 1, 0
  %v236 = vlaneseq
  %v237 = vshrl.u32 %v236, 7
  %v238 = vsub.s32 0, %v237
  %v239 = vrot.slane %v235, %v238
  %v240 = vlaneseq
  %v241 = vshrl.u32 %v240, 7
  %v242 = vsub.s32 1, %v241
  %v243 = vrot.slane %v235, %v242
  %vm244 = vcmp.eq.s32.totalorder %v239, 1
  %vm245 = vcmp.eq.s32.totalorder %v243, 1
  %v246 = vsel %vm244, %v112, 0.0
  %v247 = vsel %vm245, %v114, 0.0
  %v248 = vsel %vm172, %v246, 0.0
  %v249 = vsel %vm174, %v247, 0.0
  %v250 = vadd.f32 %v248, %v249
  %251 = vadd.xlane.f32.xlu0 %v250
  %v252 = vpop.xlane.xlu0 %251
  %v253 = vadd.f32 %v217, %v252
  %v254 = vmul.f32 %v246, %v246
  %v255 = vmul.f32 %v247, %v247
  %v256 = vsel %vm172, %v254, 0.0
  %v257 = vsel %vm174, %v255, 0.0
  %v258 = vadd.f32 %v256, %v257
  %259 = vadd.xlane.f32.xlu0 %v258
  %v260 = vpop.xlane.xlu0 %259
  %v261 = vadd.f32 %v228, %v260
  %vm262 = vmand %vm232, %vm191
  %vm263 = vmand %vm262, %vm157
  %v264 = vsel %vm263, 1, 0
  %v265 = vlaneseq
  %v266 = vshrl.u32 %v265, 7
  %v267 = vsub.s32 0, %v266
  %v268 = vrot.slane %v264, %v267
  %v269 = vlaneseq
  %v270 = vshrl.u32 %v269, 7
  %v271 = vsub.s32 1, %v270
  %v272 = vrot.slane %v264, %v271
  %vm273 = vcmp.eq.s32.totalorder %v268, 1
  %vm274 = vcmp.eq.s32.totalorder %v272, 1
  %v275 = vsel %vm273, %v112, 0.0
  %v276 = vsel %vm274, %v114, 0.0
  %v277 = vsel %vm207, %v275, 0.0
  %v278 = vsel %vm209, %v276, 0.0
  %v279 = vadd.f32 %v277, %v278
  %280 = vadd.xlane.f32.xlu0 %v279
  %v281 = vpop.xlane.xlu0 %280
  %v283 = vrot.slane %v281, 4
  %v285 = vadd.f32 %v253, %v283
  %v286 = vmul.f32 %v275, %v275
  %v287 = vmul.f32 %v276, %v276
  %v288 = vsel %vm207, %v286, 0.0
  %v289 = vsel %vm209, %v287, 0.0
  %v290 = vadd.f32 %v288, %v289
  %291 = vadd.xlane.f32.xlu0 %v290
  %v292 = vpop.xlane.xlu0 %291
  %v294 = vrot.slane %v292, 4
  %v296 = vadd.f32 %v261, %v294
  %v297 = vld [vmem:[%s4] sm:$0xf]
  %v298 = vadd.f32 %v297, %v285
  %vm299 = vcmask 3072
  %300 = vst.msk [vmem:[%s4] sm:$0xf] %vm299, %v298
  %v301 = vld [vmem:[%s4] sm:$0xf]
  %303 = vrot.lane.b32.xlu0 %v296, 1
  %v304 = vpop.permute.xlu0 %303
  %v306 = vadd.f32 %v301, %v304
  %vm307 = vcmask 11272
  %308 = vst.msk [vmem:[%s4] sm:$0xf] %vm307, %v306
  // Predicated region
  $region18: #{unet_block_innermost.3} parent=0 // pred_check
    _
  $region19: #{unet_block_innermost.3} parent=0 // pred_check_branch
    %310 = sbr.rel (0) target = $region21
  $region20: #{unet_block_innermost.3} parent=0 // pred_region
    _
  $region21: #{unet_block_innermost.3} parent=0 // pred_fallthru
    _
  // Predicated region
  $region22: #{unet_block_innermost.3} parent=0 // pred_check
    _
  $region23: #{unet_block_innermost.3} parent=0 // pred_check_branch
    %312 = sbr.rel (0) target = $region25
  $region24: #{unet_block_innermost.3} parent=0 // pred_region
    _
  $region25: #{unet_block_innermost.3} parent=0 // pred_fallthru
    _
  // Predicated region
  $region26: #{unet_block_innermost.3} parent=0 // pred_check
    _
  $region27: #{unet_block_innermost.3} parent=0 // pred_check_branch
    %314 = sbr.rel (0) target = $region29
  $region28: #{unet_block_innermost.3} parent=0 // pred_region
    _
  $region29: #{unet_block_innermost.3} parent=0 // pred_fallthru
    _
  // Predicated region
  $region30: #{unet_block_innermost.3} parent=0 // pred_check
    _
  $region31: #{unet_block_innermost.3} parent=0 // pred_check_branch
    %316 = sbr.rel (0) target = $region33
  $region32: #{unet_block_innermost.3} parent=0 // pred_region
    _
  $region33: #{unet_block_innermost.3} parent=0 // pred_fallthru
    _

</llo_original>
